<compile_context>
chip_gen: v7x
topology: tpu7x:2x2x1
jax: 0.10.0
libtpu: 0.0.40
codegen_flags: <defaults>
</compile_context>

<pallas_src>
import functools

import jax
import jax.numpy as jnp
from jax import lax
from jax.experimental import pallas as pl
from jax.experimental.pallas import tpu as pltpu


def _round_up(x, m):
    return (x + m - 1) // m * m


def textrnn_kernel(x_ref, h0_ref, wih_ref, whh_ref, b_ref, wout_ref, bout_ref,
                   out_ref, xproj_ref, *, seq_len, bpad):
    """Whole TextRNN forward in a single invocation.

    x_ref     : (seq_len*bpad, Cp)  time-major, flattened, MXU dtype
    h0_ref    : (bpad, Hp)          f32
    wih_ref   : (Cp, Hp)            MXU dtype  (W_ih^T, zero padded)
    whh_ref   : (Hp, Hp)            MXU dtype  (W_hh^T, zero padded)
    b_ref     : (1, Hp)             f32        (b_ih + b_hh, zero padded)
    wout_ref  : (Hp, Cp)            MXU dtype  (W_out^T, zero padded)
    bout_ref  : (1, Cp)             f32
    out_ref   : (bpad, Cp)          f32
    xproj_ref : (seq_len, bpad, Hp) f32 VMEM scratch (per-timestep input proj)
    """
    # Preamble: non-recurrent projection for all timesteps as ONE MXU pass,
    # bias broadcast fused in (off the serial path).
    xp = (jnp.dot(x_ref[...], wih_ref[...], preferred_element_type=jnp.float32)
          + b_ref[...])
    # Scatter into the 3-D per-timestep scratch with static, sublane-aligned
    # slices (bpad is a multiple of 8 -> pure vreg selection, no relayout).
    for s in range(seq_len):
        xproj_ref[s] = xp[s * bpad:(s + 1) * bpad, :]

    # Serial recurrence: h = tanh(xproj[t] + h @ W_hh^T).  The dot reads the
    # RHS straight from VMEM each unrolled step (keeps vreg pressure low and
    # lets Mosaic keep the identical RHS staged for the MXU).
    def step(t, h):
        pre = xproj_ref[t] + jnp.dot(h.astype(whh_ref.dtype), whh_ref[...],
                                     preferred_element_type=jnp.float32)
        return jnp.tanh(pre)                               # EUP, f32

    h_last = lax.fori_loop(0, seq_len, step, h0_ref[...],
                           unroll=(seq_len if seq_len <= 32 else 8))

    # Final Linear: out = h_last @ W_out^T + b
    out_ref[...] = (
        jnp.dot(h_last.astype(wout_ref.dtype), wout_ref[...],
                preferred_element_type=jnp.float32)
        + bout_ref[...])


def textrnn_forward(hidden, X, params, *, mxu_dtype=jnp.bfloat16):
    """hidden: (1, batch, n_hidden) like PyTorch h0; X: (batch, seq, n_class)."""
    batch, seq_len, n_class = X.shape
    n_hidden = params["W_hh"].shape[0]

    bpad = _round_up(batch, 8)        # sublane
    cpad = _round_up(n_class, 128)    # lane
    hpad = _round_up(n_hidden, 128)   # lane (keep 128, not 256 — latency chain)

    f32 = jnp.float32
    # ---- glue (plain JAX): cast first (half the copy bytes), then layout ----
    # TODO(synk): for large S, produce X time-major upstream (or remap via a
    # seq-chunk grid index_map) so no pre-transposed copy of X is materialized.
    x_tm = jnp.transpose(X.astype(mxu_dtype), (1, 0, 2))             # (S, B, C)
    x_tm = jnp.pad(x_tm, ((0, 0), (0, bpad - batch), (0, cpad - n_class)))
    x2 = x_tm.reshape(seq_len * bpad, cpad)                          # (S*Bp, Cp)

    h0 = jnp.pad(hidden[0].astype(f32),
                 ((0, bpad - batch), (0, hpad - n_hidden)))          # (Bp, Hp)

    w_ih = jnp.pad(params["W_ih"].T.astype(f32),
                   ((0, cpad - n_class), (0, hpad - n_hidden))).astype(mxu_dtype)
    w_hh = jnp.pad(params["W_hh"].T.astype(f32),
                   ((0, hpad - n_hidden), (0, hpad - n_hidden))).astype(mxu_dtype)
    b = jnp.pad((params["b_ih"] + params["b_hh"]).astype(f32),
                (0, hpad - n_hidden)).reshape(1, hpad)
    w_out = jnp.pad(params["W_out"].T.astype(f32),
                    ((0, hpad - n_hidden), (0, cpad - n_class))).astype(mxu_dtype)
    b_out = jnp.pad(params["b_out"].astype(f32),
                    (0, cpad - n_class)).reshape(1, cpad)

    # VMEM budget: everything is resident once (no grid, no double-buffering).
    # TODO(synk): for long sequences store xproj in bf16 or chunk the preamble
    # over seq (emit_pipeline) to bound residency on v7x's 64 MiB VMEM.
    isz = jnp.dtype(mxu_dtype).itemsize
    resident_bytes = (
        seq_len * bpad * cpad * isz            # x2
        + seq_len * bpad * hpad * 4            # xproj scratch (f32)
        + bpad * hpad * 4                      # h0
        + (cpad * hpad + hpad * hpad + hpad * cpad) * isz   # weights
        + (hpad + cpad) * 4                    # biases
        + bpad * cpad * 4)                     # out
    vmem_limit = min(max(2 * resident_bytes + (4 << 20), 16 << 20), 64 << 20)

    kernel = functools.partial(textrnn_kernel, seq_len=seq_len, bpad=bpad)
    vmem = lambda: pl.BlockSpec(memory_space=pltpu.MemorySpace.VMEM)

    out = pl.pallas_call(
        kernel,
        out_shape=jax.ShapeDtypeStruct((bpad, cpad), jnp.float32),
        in_specs=[vmem() for _ in range(7)],
        out_specs=vmem(),
        scratch_shapes=[pltpu.VMEM((seq_len, bpad, hpad), jnp.float32)],
        compiler_params=pltpu.CompilerParams(vmem_limit_bytes=vmem_limit),
        # TODO(synk): on v7x with bpad >= 16, add a leading grid=(2,) axis with
        # dimension_semantics=("parallel",) splitting the batch sublanes across
        # the two TensorCores (independent recurrences); not worth it at bpad=8.
    )(x2, h0, w_ih, w_hh, b, w_out, b_out)

    return out[:batch, :n_class]


def textrnn_reference(hidden, X, params):
    """Pure-JAX f32 reference matching the PyTorch forward exactly."""
    h = hidden[0]
    seq_len = X.shape[1]
    for t in range(seq_len):
        x = X[:, t, :]
        h = jnp.tanh(x @ params["W_ih"].T + params["b_ih"]
                     + h @ params["W_hh"].T + params["b_hh"])
    return h @ params["W_out"].T + params["b_out"]


def init_params(key, n_class, n_hidden):
    """Deterministic init mirroring biRNN.reset_parameters / TextRNN.__init__."""
    stdv = 1.0 / (n_hidden ** 0.5)
    ks = jax.random.split(key, 5)
    u = lambda k, shape, s: jax.random.uniform(k, shape, jnp.float32, -s, s)
    return {
        "W_ih": u(ks[0], (n_hidden, n_class), stdv),
        "W_hh": u(ks[1], (n_hidden, n_hidden), stdv),
        "b_ih": u(ks[2], (n_hidden,), stdv),
        "b_hh": u(ks[3], (n_hidden,), stdv),
        # nn.Linear(n_hidden, n_class, bias=False)
        "W_out": u(ks[4], (n_class, n_hidden), stdv),
        # self.b = nn.Parameter(torch.ones([n_class]))
        "b_out": jnp.ones((n_class,), jnp.float32),
    }


if __name__ == "__main__":
    batch, seq_len, n_class, n_hidden = 2, 8, 16, 32

    key = jax.random.PRNGKey(0)
    k_x, k_p = jax.random.split(key)

    X = jax.random.normal(k_x, (batch, seq_len, n_class), jnp.float32)
    hidden0 = jnp.zeros((1, batch, n_hidden), jnp.float32)   # h0 as in the tutorial
    params = init_params(k_p, n_class, n_hidden)

    ref = textrnn_reference(hidden0, X, params)

    # f32 MXU operands: tight correctness gate.
    out_f32 = jax.block_until_ready(
        textrnn_forward(hidden0, X, params, mxu_dtype=jnp.float32))
    assert out_f32.shape == (batch, n_class)
    assert jnp.allclose(out_f32, ref, atol=1e-4, rtol=1e-4), \
        "f32 mismatch vs JAX reference"

    # Default (bf16 MXU operands, f32 accumulation) — the perf configuration.
    # Expected error ~1e-2 from operand rounding only.
    out_bf16 = jax.block_until_ready(textrnn_forward(hidden0, X, params))
    assert out_bf16.shape == (batch, n_class)
    assert jnp.allclose(out_bf16, ref, atol=3e-2, rtol=3e-2), \
        "bf16 mismatch vs JAX reference"

    print("KERNEL_OK")
</pallas_src>

<mosaic_0001>
module attributes {stable_mosaic.version = 11 : i64} {
  func.func @textrnn_kernel(%arg0: memref<64x128xf32, #tpu.memory_space<vmem>>, %arg1: memref<8x128xf32, #tpu.memory_space<vmem>>, %arg2: memref<128x128xf32, #tpu.memory_space<vmem>>, %arg3: memref<128x128xf32, #tpu.memory_space<vmem>>, %arg4: memref<1x128xf32, #tpu.memory_space<vmem>>, %arg5: memref<128x128xf32, #tpu.memory_space<vmem>>, %arg6: memref<1x128xf32, #tpu.memory_space<vmem>>, %arg7: memref<8x128xf32, #tpu.memory_space<vmem>>, %arg8: memref<8x8x128xf32, #tpu.memory_space<vmem>>) attributes {dimension_semantics = [], scalar_prefetch = 0 : i64, scratch_operands = 1 : i64, tpu.core_type = #tpu.core_type<tc>} {
    %c0 = arith.constant 0 : index
    %c0_0 = arith.constant 0 : index
    %0 = vector.load %arg0[%c0, %c0_0] : memref<64x128xf32, #tpu.memory_space<vmem>>, vector<64x128xf32>
    %c0_1 = arith.constant 0 : index
    %c0_2 = arith.constant 0 : index
    %1 = vector.load %arg2[%c0_1, %c0_2] : memref<128x128xf32, #tpu.memory_space<vmem>>, vector<128x128xf32>
    %cst = arith.constant dense<0.000000e+00> : vector<64x128xf32>
    %2 = tpu.matmul %0, %1, %cst {dimension_numbers = #tpu.dot_dimension_numbers<[1], [0], [0], [1], [0, 0, 1, 1], [], []>} : vector<64x128xf32>, vector<128x128xf32>, vector<64x128xf32> -> vector<64x128xf32>
    %c0_3 = arith.constant 0 : index
    %c0_4 = arith.constant 0 : index
    %3 = vector.load %arg4[%c0_3, %c0_4] : memref<1x128xf32, #tpu.memory_space<vmem>>, vector<1x128xf32>
    %4 = vector.broadcast %3 : vector<1x128xf32> to vector<64x128xf32>
    %5 = arith.addf %2, %4 : vector<64x128xf32>
    %6 = vector.extract_strided_slice %5 {offsets = [0, 0], sizes = [8, 128], strides = [1, 1]} : vector<64x128xf32> to vector<8x128xf32>
    %c0_5 = arith.constant 0 : index
    %c0_6 = arith.constant 0 : index
    %c0_7 = arith.constant 0 : index
    %7 = vector.load %arg8[%c0_5, %c0_6, %c0_7] : memref<8x8x128xf32, #tpu.memory_space<vmem>>, vector<1x8x128xf32>
    %8 = vector.shape_cast %7 : vector<1x8x128xf32> to vector<8x128xf32>
    %9 = vector.shape_cast %6 : vector<8x128xf32> to vector<1x8x128xf32>
    tpu.vector_store %arg8[%c0_5, %c0_6, %c0_7], %9 {strides = array<i32>} : memref<8x8x128xf32, #tpu.memory_space<vmem>>, vector<1x8x128xf32>,
    %10 = vector.extract_strided_slice %5 {offsets = [8, 0], sizes = [8, 128], strides = [1, 1]} : vector<64x128xf32> to vector<8x128xf32>
    %c1 = arith.constant 1 : index
    %c0_8 = arith.constant 0 : index
    %c0_9 = arith.constant 0 : index
    %11 = vector.load %arg8[%c1, %c0_8, %c0_9] : memref<8x8x128xf32, #tpu.memory_space<vmem>>, vector<1x8x128xf32>
    %12 = vector.shape_cast %11 : vector<1x8x128xf32> to vector<8x128xf32>
    %13 = vector.shape_cast %10 : vector<8x128xf32> to vector<1x8x128xf32>
    tpu.vector_store %arg8[%c1, %c0_8, %c0_9], %13 {strides = array<i32>} : memref<8x8x128xf32, #tpu.memory_space<vmem>>, vector<1x8x128xf32>,
    %14 = vector.extract_strided_slice %5 {offsets = [16, 0], sizes = [8, 128], strides = [1, 1]} : vector<64x128xf32> to vector<8x128xf32>
    %c2 = arith.constant 2 : index
    %c0_10 = arith.constant 0 : index
    %c0_11 = arith.constant 0 : index
    %15 = vector.load %arg8[%c2, %c0_10, %c0_11] : memref<8x8x128xf32, #tpu.memory_space<vmem>>, vector<1x8x128xf32>
    %16 = vector.shape_cast %15 : vector<1x8x128xf32> to vector<8x128xf32>
    %17 = vector.shape_cast %14 : vector<8x128xf32> to vector<1x8x128xf32>
    tpu.vector_store %arg8[%c2, %c0_10, %c0_11], %17 {strides = array<i32>} : memref<8x8x128xf32, #tpu.memory_space<vmem>>, vector<1x8x128xf32>,
    %18 = vector.extract_strided_slice %5 {offsets = [24, 0], sizes = [8, 128], strides = [1, 1]} : vector<64x128xf32> to vector<8x128xf32>
    %c3 = arith.constant 3 : index
    %c0_12 = arith.constant 0 : index
    %c0_13 = arith.constant 0 : index
    %19 = vector.load %arg8[%c3, %c0_12, %c0_13] : memref<8x8x128xf32, #tpu.memory_space<vmem>>, vector<1x8x128xf32>
    %20 = vector.shape_cast %19 : vector<1x8x128xf32> to vector<8x128xf32>
    %21 = vector.shape_cast %18 : vector<8x128xf32> to vector<1x8x128xf32>
    tpu.vector_store %arg8[%c3, %c0_12, %c0_13], %21 {strides = array<i32>} : memref<8x8x128xf32, #tpu.memory_space<vmem>>, vector<1x8x128xf32>,
    %22 = vector.extract_strided_slice %5 {offsets = [32, 0], sizes = [8, 128], strides = [1, 1]} : vector<64x128xf32> to vector<8x128xf32>
    %c4 = arith.constant 4 : index
    %c0_14 = arith.constant 0 : index
    %c0_15 = arith.constant 0 : index
    %23 = vector.load %arg8[%c4, %c0_14, %c0_15] : memref<8x8x128xf32, #tpu.memory_space<vmem>>, vector<1x8x128xf32>
    %24 = vector.shape_cast %23 : vector<1x8x128xf32> to vector<8x128xf32>
    %25 = vector.shape_cast %22 : vector<8x128xf32> to vector<1x8x128xf32>
    tpu.vector_store %arg8[%c4, %c0_14, %c0_15], %25 {strides = array<i32>} : memref<8x8x128xf32, #tpu.memory_space<vmem>>, vector<1x8x128xf32>,
    %26 = vector.extract_strided_slice %5 {offsets = [40, 0], sizes = [8, 128], strides = [1, 1]} : vector<64x128xf32> to vector<8x128xf32>
    %c5 = arith.constant 5 : index
    %c0_16 = arith.constant 0 : index
    %c0_17 = arith.constant 0 : index
    %27 = vector.load %arg8[%c5, %c0_16, %c0_17] : memref<8x8x128xf32, #tpu.memory_space<vmem>>, vector<1x8x128xf32>
    %28 = vector.shape_cast %27 : vector<1x8x128xf32> to vector<8x128xf32>
    %29 = vector.shape_cast %26 : vector<8x128xf32> to vector<1x8x128xf32>
    tpu.vector_store %arg8[%c5, %c0_16, %c0_17], %29 {strides = array<i32>} : memref<8x8x128xf32, #tpu.memory_space<vmem>>, vector<1x8x128xf32>,
    %30 = vector.extract_strided_slice %5 {offsets = [48, 0], sizes = [8, 128], strides = [1, 1]} : vector<64x128xf32> to vector<8x128xf32>
    %c6 = arith.constant 6 : index
    %c0_18 = arith.constant 0 : index
    %c0_19 = arith.constant 0 : index
    %31 = vector.load %arg8[%c6, %c0_18, %c0_19] : memref<8x8x128xf32, #tpu.memory_space<vmem>>, vector<1x8x128xf32>
    %32 = vector.shape_cast %31 : vector<1x8x128xf32> to vector<8x128xf32>
    %33 = vector.shape_cast %30 : vector<8x128xf32> to vector<1x8x128xf32>
    tpu.vector_store %arg8[%c6, %c0_18, %c0_19], %33 {strides = array<i32>} : memref<8x8x128xf32, #tpu.memory_space<vmem>>, vector<1x8x128xf32>,
    %34 = vector.extract_strided_slice %5 {offsets = [56, 0], sizes = [8, 128], strides = [1, 1]} : vector<64x128xf32> to vector<8x128xf32>
    %c7 = arith.constant 7 : index
    %c0_20 = arith.constant 0 : index
    %c0_21 = arith.constant 0 : index
    %35 = vector.load %arg8[%c7, %c0_20, %c0_21] : memref<8x8x128xf32, #tpu.memory_space<vmem>>, vector<1x8x128xf32>
    %36 = vector.shape_cast %35 : vector<1x8x128xf32> to vector<8x128xf32>
    %37 = vector.shape_cast %34 : vector<8x128xf32> to vector<1x8x128xf32>
    tpu.vector_store %arg8[%c7, %c0_20, %c0_21], %37 {strides = array<i32>} : memref<8x8x128xf32, #tpu.memory_space<vmem>>, vector<1x8x128xf32>,
    %c0_22 = arith.constant 0 : index
    %c0_23 = arith.constant 0 : index
    %38 = vector.load %arg1[%c0_22, %c0_23] : memref<8x128xf32, #tpu.memory_space<vmem>>, vector<8x128xf32>
    %c0_i32 = arith.constant 0 : i32
    %39 = arith.index_cast %c0_i32 : i32 to index
    %c0_24 = arith.constant 0 : index
    %c0_25 = arith.constant 0 : index
    %40 = vector.load %arg8[%39, %c0_24, %c0_25] : memref<8x8x128xf32, #tpu.memory_space<vmem>>, vector<1x8x128xf32>
    %41 = vector.shape_cast %40 : vector<1x8x128xf32> to vector<8x128xf32>
    %c0_26 = arith.constant 0 : index
    %c0_27 = arith.constant 0 : index
    %42 = vector.load %arg3[%c0_26, %c0_27] : memref<128x128xf32, #tpu.memory_space<vmem>>, vector<128x128xf32>
    %cst_28 = arith.constant dense<0.000000e+00> : vector<8x128xf32>
    %43 = tpu.matmul %38, %42, %cst_28 {dimension_numbers = #tpu.dot_dimension_numbers<[1], [0], [0], [1], [0, 0, 1, 1], [], []>} : vector<8x128xf32>, vector<128x128xf32>, vector<8x128xf32> -> vector<8x128xf32>
    %44 = arith.addf %41, %43 : vector<8x128xf32>
    %45 = math.tanh %44 : vector<8x128xf32>
    %c1_i32 = arith.constant 1 : i32
    %46 = arith.index_cast %c1_i32 : i32 to index
    %c0_29 = arith.constant 0 : index
    %c0_30 = arith.constant 0 : index
    %47 = vector.load %arg8[%46, %c0_29, %c0_30] : memref<8x8x128xf32, #tpu.memory_space<vmem>>, vector<1x8x128xf32>
    %48 = vector.shape_cast %47 : vector<1x8x128xf32> to vector<8x128xf32>
    %c0_31 = arith.constant 0 : index
    %c0_32 = arith.constant 0 : index
    %49 = vector.load %arg3[%c0_31, %c0_32] : memref<128x128xf32, #tpu.memory_space<vmem>>, vector<128x128xf32>
    %cst_33 = arith.constant dense<0.000000e+00> : vector<8x128xf32>
    %50 = tpu.matmul %45, %49, %cst_33 {dimension_numbers = #tpu.dot_dimension_numbers<[1], [0], [0], [1], [0, 0, 1, 1], [], []>} : vector<8x128xf32>, vector<128x128xf32>, vector<8x128xf32> -> vector<8x128xf32>
    %51 = arith.addf %48, %50 : vector<8x128xf32>
    %52 = math.tanh %51 : vector<8x128xf32>
    %c2_i32 = arith.constant 2 : i32
    %53 = arith.index_cast %c2_i32 : i32 to index
    %c0_34 = arith.constant 0 : index
    %c0_35 = arith.constant 0 : index
    %54 = vector.load %arg8[%53, %c0_34, %c0_35] : memref<8x8x128xf32, #tpu.memory_space<vmem>>, vector<1x8x128xf32>
    %55 = vector.shape_cast %54 : vector<1x8x128xf32> to vector<8x128xf32>
    %c0_36 = arith.constant 0 : index
    %c0_37 = arith.constant 0 : index
    %56 = vector.load %arg3[%c0_36, %c0_37] : memref<128x128xf32, #tpu.memory_space<vmem>>, vector<128x128xf32>
    %cst_38 = arith.constant dense<0.000000e+00> : vector<8x128xf32>
    %57 = tpu.matmul %52, %56, %cst_38 {dimension_numbers = #tpu.dot_dimension_numbers<[1], [0], [0], [1], [0, 0, 1, 1], [], []>} : vector<8x128xf32>, vector<128x128xf32>, vector<8x128xf32> -> vector<8x128xf32>
    %58 = arith.addf %55, %57 : vector<8x128xf32>
    %59 = math.tanh %58 : vector<8x128xf32>
    %c3_i32 = arith.constant 3 : i32
    %60 = arith.index_cast %c3_i32 : i32 to index
    %c0_39 = arith.constant 0 : index
    %c0_40 = arith.constant 0 : index
    %61 = vector.load %arg8[%60, %c0_39, %c0_40] : memref<8x8x128xf32, #tpu.memory_space<vmem>>, vector<1x8x128xf32>
    %62 = vector.shape_cast %61 : vector<1x8x128xf32> to vector<8x128xf32>
    %c0_41 = arith.constant 0 : index
    %c0_42 = arith.constant 0 : index
    %63 = vector.load %arg3[%c0_41, %c0_42] : memref<128x128xf32, #tpu.memory_space<vmem>>, vector<128x128xf32>
    %cst_43 = arith.constant dense<0.000000e+00> : vector<8x128xf32>
    %64 = tpu.matmul %59, %63, %cst_43 {dimension_numbers = #tpu.dot_dimension_numbers<[1], [0], [0], [1], [0, 0, 1, 1], [], []>} : vector<8x128xf32>, vector<128x128xf32>, vector<8x128xf32> -> vector<8x128xf32>
    %65 = arith.addf %62, %64 : vector<8x128xf32>
    %66 = math.tanh %65 : vector<8x128xf32>
    %c4_i32 = arith.constant 4 : i32
    %67 = arith.index_cast %c4_i32 : i32 to index
    %c0_44 = arith.constant 0 : index
    %c0_45 = arith.constant 0 : index
    %68 = vector.load %arg8[%67, %c0_44, %c0_45] : memref<8x8x128xf32, #tpu.memory_space<vmem>>, vector<1x8x128xf32>
    %69 = vector.shape_cast %68 : vector<1x8x128xf32> to vector<8x128xf32>
    %c0_46 = arith.constant 0 : index
    %c0_47 = arith.constant 0 : index
    %70 = vector.load %arg3[%c0_46, %c0_47] : memref<128x128xf32, #tpu.memory_space<vmem>>, vector<128x128xf32>
    %cst_48 = arith.constant dense<0.000000e+00> : vector<8x128xf32>
    %71 = tpu.matmul %66, %70, %cst_48 {dimension_numbers = #tpu.dot_dimension_numbers<[1], [0], [0], [1], [0, 0, 1, 1], [], []>} : vector<8x128xf32>, vector<128x128xf32>, vector<8x128xf32> -> vector<8x128xf32>
    %72 = arith.addf %69, %71 : vector<8x128xf32>
    %73 = math.tanh %72 : vector<8x128xf32>
    %c5_i32 = arith.constant 5 : i32
    %74 = arith.index_cast %c5_i32 : i32 to index
    %c0_49 = arith.constant 0 : index
    %c0_50 = arith.constant 0 : index
    %75 = vector.load %arg8[%74, %c0_49, %c0_50] : memref<8x8x128xf32, #tpu.memory_space<vmem>>, vector<1x8x128xf32>
    %76 = vector.shape_cast %75 : vector<1x8x128xf32> to vector<8x128xf32>
    %c0_51 = arith.constant 0 : index
    %c0_52 = arith.constant 0 : index
    %77 = vector.load %arg3[%c0_51, %c0_52] : memref<128x128xf32, #tpu.memory_space<vmem>>, vector<128x128xf32>
    %cst_53 = arith.constant dense<0.000000e+00> : vector<8x128xf32>
    %78 = tpu.matmul %73, %77, %cst_53 {dimension_numbers = #tpu.dot_dimension_numbers<[1], [0], [0], [1], [0, 0, 1, 1], [], []>} : vector<8x128xf32>, vector<128x128xf32>, vector<8x128xf32> -> vector<8x128xf32>
    %79 = arith.addf %76, %78 : vector<8x128xf32>
    %80 = math.tanh %79 : vector<8x128xf32>
    %c6_i32 = arith.constant 6 : i32
    %81 = arith.index_cast %c6_i32 : i32 to index
    %c0_54 = arith.constant 0 : index
    %c0_55 = arith.constant 0 : index
    %82 = vector.load %arg8[%81, %c0_54, %c0_55] : memref<8x8x128xf32, #tpu.memory_space<vmem>>, vector<1x8x128xf32>
    %83 = vector.shape_cast %82 : vector<1x8x128xf32> to vector<8x128xf32>
    %c0_56 = arith.constant 0 : index
    %c0_57 = arith.constant 0 : index
    %84 = vector.load %arg3[%c0_56, %c0_57] : memref<128x128xf32, #tpu.memory_space<vmem>>, vector<128x128xf32>
    %cst_58 = arith.constant dense<0.000000e+00> : vector<8x128xf32>
    %85 = tpu.matmul %80, %84, %cst_58 {dimension_numbers = #tpu.dot_dimension_numbers<[1], [0], [0], [1], [0, 0, 1, 1], [], []>} : vector<8x128xf32>, vector<128x128xf32>, vector<8x128xf32> -> vector<8x128xf32>
    %86 = arith.addf %83, %85 : vector<8x128xf32>
    %87 = math.tanh %86 : vector<8x128xf32>
    %c7_i32 = arith.constant 7 : i32
    %88 = arith.index_cast %c7_i32 : i32 to index
    %c0_59 = arith.constant 0 : index
    %c0_60 = arith.constant 0 : index
    %89 = vector.load %arg8[%88, %c0_59, %c0_60] : memref<8x8x128xf32, #tpu.memory_space<vmem>>, vector<1x8x128xf32>
    %90 = vector.shape_cast %89 : vector<1x8x128xf32> to vector<8x128xf32>
    %c0_61 = arith.constant 0 : index
    %c0_62 = arith.constant 0 : index
    %91 = vector.load %arg3[%c0_61, %c0_62] : memref<128x128xf32, #tpu.memory_space<vmem>>, vector<128x128xf32>
    %cst_63 = arith.constant dense<0.000000e+00> : vector<8x128xf32>
    %92 = tpu.matmul %87, %91, %cst_63 {dimension_numbers = #tpu.dot_dimension_numbers<[1], [0], [0], [1], [0, 0, 1, 1], [], []>} : vector<8x128xf32>, vector<128x128xf32>, vector<8x128xf32> -> vector<8x128xf32>
    %93 = arith.addf %90, %92 : vector<8x128xf32>
    %94 = math.tanh %93 : vector<8x128xf32>
    %c8_i32 = arith.constant 8 : i32
    %c0_64 = arith.constant 0 : index
    %c0_65 = arith.constant 0 : index
    %95 = vector.load %arg5[%c0_64, %c0_65] : memref<128x128xf32, #tpu.memory_space<vmem>>, vector<128x128xf32>
    %cst_66 = arith.constant dense<0.000000e+00> : vector<8x128xf32>
    %96 = tpu.matmul %94, %95, %cst_66 {dimension_numbers = #tpu.dot_dimension_numbers<[1], [0], [0], [1], [0, 0, 1, 1], [], []>} : vector<8x128xf32>, vector<128x128xf32>, vector<8x128xf32> -> vector<8x128xf32>
    %c0_67 = arith.constant 0 : index
    %c0_68 = arith.constant 0 : index
    %97 = vector.load %arg6[%c0_67, %c0_68] : memref<1x128xf32, #tpu.memory_space<vmem>>, vector<1x128xf32>
    %98 = vector.broadcast %97 : vector<1x128xf32> to vector<8x128xf32>
    %99 = arith.addf %96, %98 : vector<8x128xf32>
    %c0_69 = arith.constant 0 : index
    %c0_70 = arith.constant 0 : index
    %100 = vector.load %arg7[%c0_69, %c0_70] : memref<8x128xf32, #tpu.memory_space<vmem>>, vector<8x128xf32>
    tpu.vector_store %arg7[%c0_69, %c0_70], %99 {strides = array<i32>} : memref<8x128xf32, #tpu.memory_space<vmem>>, vector<8x128xf32>,
    return
  }
}

</mosaic_0001>

<llo_original>
// kernel: tpu_custom_call.1
$region0: #{tpu_custom_call.1}
  #allocation0 [shape = 'u32[]', space=smem, size = 0x4, offset = 0x4, fixed_abs, tag = 'smem constant byte address 0x4 - core index']
  #allocation1 [shape = 'u32[144,128]{1,0:T(1,128)}', space=vmem, size = 0x12000, scoped, tag = 'internal scratch']
  #allocation2 [shape = 'f32[8,8,128]{2,1,0:T(8,128)}', space=vmem, size = 0x8000, scoped, tag = 'scratch operand']
  %s0 = inlined_call_operand.hbm [shape: f32[64,128], index: 0, kind: input, shape index: {}]
  %s1 = inlined_call_operand.hbm [shape: f32[8,128], index: 1, kind: input, shape index: {}]
  %s2 = inlined_call_operand.hbm [shape: f32[128,128], index: 2, kind: input, shape index: {}]
  %s3 = inlined_call_operand.hbm [shape: f32[128,128], index: 3, kind: input, shape index: {}]
  %s4 = inlined_call_operand.vmem [shape: f32[1,128], index: 4, kind: input, shape index: {}]
  %s5 = inlined_call_operand.hbm [shape: f32[128,128], index: 5, kind: input, shape index: {}]
  %s6 = inlined_call_operand.vmem [shape: f32[1,128], index: 6, kind: input, shape index: {}]
  %s7 = inlined_call_operand.hbm [shape: f32[8,128], index: 7, kind: output, shape index: {}]
  %s8 = sld [smem:[#allocation0]]
  $region58: #{tpu_custom_call.1} parent=0
    _
  %s10 = ssub.s32 1, %s8
  %s11 = scalar_select 0, %s10, %s8
  $region1: #{tpu_custom_call.1} parent=0
    #allocation3 [shape = 'u8[32768]{0}', space=vmem, size = 0x8000, scoped, tag = 'input window, operand 0, single buffered']
    #allocation4 [shape = 's32[1]{0}', space=sflag, size = 0x4, scoped, tag = 'scoped memory for tpu_custom_call.1']
    #allocation5 [shape = 's32[1]{0}', space=sflag, size = 0x4, scoped, tag = 'scoped memory for tpu_custom_call.1']
    #allocation6 [shape = 'u8[4096]{0}', space=vmem, size = 0x1000, scoped, tag = 'input window, operand 1, single buffered']
    #allocation7 [shape = 's32[1]{0}', space=sflag, size = 0x4, scoped, tag = 'scoped memory for tpu_custom_call.1']
    #allocation8 [shape = 'u8[65536]{0}', space=vmem, size = 0x10000, scoped, tag = 'input window, operand 2, single buffered']
    #allocation9 [shape = 'u8[65536]{0}', space=vmem, size = 0x10000, scoped, tag = 'input window, operand 3, single buffered']
    #allocation10 [shape = 's32[1]{0}', space=sflag, size = 0x4, scoped, tag = 'scoped memory for tpu_custom_call.1']
    #allocation11 [shape = 'u8[65536]{0}', space=vmem, size = 0x10000, scoped, tag = 'input window, operand 5, single buffered']
    #allocation12 [shape = 'u8[4096]{0}', space=vmem, size = 0x1000, scoped, tag = 'output window, operand 0, single buffered']
    %12 = vsyncpa [#allocation4], 0
    %13 = vsyncpa [#allocation7], 0
    %14 = vsyncpa [#allocation10], 0
    %15 = vsyncpa [#allocation5], 0
    // Predicated region
    $region2: #{tpu_custom_call.1} parent=1 // pred_check
      _
    $region3: #{tpu_custom_call.1} parent=1 // pred_check_branch
      %17 = sbr.rel (0) target = $region5
    $region4: #{tpu_custom_call.1} parent=1 // pred_region
      %s19 = ssub.s32 1024, 1024
      %20 = vsyncadd [#allocation4], %s19
      %s21 = sshll.u32 [#allocation3], 4
      %s22 = int_to_ptr.vmem [resolvable:$true] %s21
      %27 = dma.hbm_to_vmem [thread:$0]  %s0, 1024, %s22, [#allocation4], 128, 128, 8
    $region5: #{tpu_custom_call.1} parent=1 // pred_fallthru
      _
    // Predicated region
    $region6: #{tpu_custom_call.1} parent=1 // pred_check
      _
    $region7: #{tpu_custom_call.1} parent=1 // pred_check_branch
      %29 = sbr.rel (0) target = $region9
    $region8: #{tpu_custom_call.1} parent=1 // pred_region
      %s31 = ssub.s32 128, 128
      %32 = vsyncadd [#allocation7], %s31
      %s34 = sshll.u32 [#allocation6], 4
      %s35 = int_to_ptr.vmem [resolvable:$true] %s34
      %37 = dma.hbm_to_vmem [thread:$0]  %s1, 128, %s35, [#allocation7]
    $region9: #{tpu_custom_call.1} parent=1 // pred_fallthru
      _
    // Predicated region
    $region10: #{tpu_custom_call.1} parent=1 // pred_check
      _
    $region11: #{tpu_custom_call.1} parent=1 // pred_check_branch
      %39 = sbr.rel (0) target = $region13
    $region12: #{tpu_custom_call.1} parent=1 // pred_region
      %s41 = ssub.s32 2048, 2048
      %42 = vsyncadd [#allocation7], %s41
      %s43 = sshll.u32 [#allocation8], 4
      %s44 = int_to_ptr.vmem [resolvable:$true] %s43
      %49 = dma.hbm_to_vmem [thread:$0]  %s2, 2048, %s44, [#allocation7], 128, 128, 8
    $region13: #{tpu_custom_call.1} parent=1 // pred_fallthru
      _
    // Predicated region
    $region14: #{tpu_custom_call.1} parent=1 // pred_check
      _
    $region15: #{tpu_custom_call.1} parent=1 // pred_check_branch
      %51 = sbr.rel (0) target = $region17
    $region16: #{tpu_custom_call.1} parent=1 // pred_region
      %s53 = ssub.s32 2048, 2048
      %54 = vsyncadd [#allocation10], %s53
      %s55 = sshll.u32 [#allocation9], 4
      %s56 = int_to_ptr.vmem [resolvable:$true] %s55
      %61 = dma.hbm_to_vmem [thread:$0]  %s3, 2048, %s56, [#allocation10], 128, 128, 8
    $region17: #{tpu_custom_call.1} parent=1 // pred_fallthru
      _
    // Predicated region
    $region18: #{tpu_custom_call.1} parent=1 // pred_check
      _
    $region19: #{tpu_custom_call.1} parent=1 // pred_check_branch
      %63 = sbr.rel (0) target = $region21
    $region20: #{tpu_custom_call.1} parent=1 // pred_region
      _
    $region21: #{tpu_custom_call.1} parent=1 // pred_fallthru
      _
    // Predicated region
    $region22: #{tpu_custom_call.1} parent=1 // pred_check
      _
    $region23: #{tpu_custom_call.1} parent=1 // pred_check_branch
      %65 = sbr.rel (0) target = $region25
    $region24: #{tpu_custom_call.1} parent=1 // pred_region
      %s67 = ssub.s32 2048, 2048
      %68 = vsyncadd [#allocation10], %s67
      %s69 = sshll.u32 [#allocation11], 4
      %s70 = int_to_ptr.vmem [resolvable:$true] %s69
      %75 = dma.hbm_to_vmem [thread:$0]  %s5, 2048, %s70, [#allocation10], 128, 128, 8
    $region25: #{tpu_custom_call.1} parent=1 // pred_fallthru
      _
    // Predicated region
    $region26: #{tpu_custom_call.1} parent=1 // pred_check
      _
    $region27: #{tpu_custom_call.1} parent=1 // pred_check_branch
      %77 = sbr.rel (0) target = $region29
    $region28: #{tpu_custom_call.1} parent=1 // pred_region
      _
    $region29: #{tpu_custom_call.1} parent=1 // pred_fallthru
      _
    // Predicated region
    $region30: #{tpu_custom_call.1} parent=1 // pred_check
      _
    $region31: #{tpu_custom_call.1} parent=1 // pred_check_branch
      %79 = sbr.rel (0) target = $region33
    $region32: #{tpu_custom_call.1} parent=1 // pred_region
      %80 = dma.done [#allocation4], 1024
    $region33: #{tpu_custom_call.1} parent=1 // pred_fallthru
      _
    // Predicated region
    $region34: #{tpu_custom_call.1} parent=1 // pred_check
      _
    $region35: #{tpu_custom_call.1} parent=1 // pred_check_branch
      %82 = sbr.rel (0) target = $region37
    $region36: #{tpu_custom_call.1} parent=1 // pred_region
      %83 = dma.done [#allocation7], 128
    $region37: #{tpu_custom_call.1} parent=1 // pred_fallthru
      _
    // Predicated region
    $region38: #{tpu_custom_call.1} parent=1 // pred_check
      _
    $region39: #{tpu_custom_call.1} parent=1 // pred_check_branch
      %85 = sbr.rel (0) target = $region41
    $region40: #{tpu_custom_call.1} parent=1 // pred_region
      %86 = dma.done [#allocation7], 2048
    $region41: #{tpu_custom_call.1} parent=1 // pred_fallthru
      _
    // Predicated region
    $region42: #{tpu_custom_call.1} parent=1 // pred_check
      _
    $region43: #{tpu_custom_call.1} parent=1 // pred_check_branch
      %88 = sbr.rel (0) target = $region45
    $region44: #{tpu_custom_call.1} parent=1 // pred_region
      %89 = dma.done [#allocation10], 2048
    $region45: #{tpu_custom_call.1} parent=1 // pred_fallthru
      _
    // Predicated region
    $region46: #{tpu_custom_call.1} parent=1 // pred_check
      _
    $region47: #{tpu_custom_call.1} parent=1 // pred_check_branch
      %91 = sbr.rel (0) target = $region49
    $region48: #{tpu_custom_call.1} parent=1 // pred_region
      %92 = dma.done [#allocation10], 2048
    $region49: #{tpu_custom_call.1} parent=1 // pred_fallthru
      _
    %v93 = vld [vmem:[#allocation3] sm:$0xff]
    %v94 = vld [vmem:[#allocation3 + $0x8] sm:$0xff]
    %v95 = vld [vmem:[#allocation3 + $0x10] sm:$0xff]
    %v96 = vld [vmem:[#allocation3 + $0x18] sm:$0xff]
    %v97 = vld [vmem:[#allocation3 + $0x20] sm:$0xff]
    %v98 = vld [vmem:[#allocation3 + $0x28] sm:$0xff]
    %v99 = vld [vmem:[#allocation3 + $0x30] sm:$0xff]
    %v100 = vld [vmem:[#allocation3 + $0x38] sm:$0xff]
    %v101 = vld [vmem:[#allocation8] sm:$0xff]
    %v102 = vld [vmem:[#allocation8 + $0x8] sm:$0xff]
    %v103 = vld [vmem:[#allocation8 + $0x10] sm:$0xff]
    %v104 = vld [vmem:[#allocation8 + $0x18] sm:$0xff]
    %v105 = vld [vmem:[#allocation8 + $0x20] sm:$0xff]
    %v106 = vld [vmem:[#allocation8 + $0x28] sm:$0xff]
    %v107 = vld [vmem:[#allocation8 + $0x30] sm:$0xff]
    %v108 = vld [vmem:[#allocation8 + $0x38] sm:$0xff]
    %v109 = vld [vmem:[#allocation8 + $0x40] sm:$0xff]
    %v110 = vld [vmem:[#allocation8 + $0x48] sm:$0xff]
    %v111 = vld [vmem:[#allocation8 + $0x50] sm:$0xff]
    %v112 = vld [vmem:[#allocation8 + $0x58] sm:$0xff]
    %v113 = vld [vmem:[#allocation8 + $0x60] sm:$0xff]
    %v114 = vld [vmem:[#allocation8 + $0x68] sm:$0xff]
    %v115 = vld [vmem:[#allocation8 + $0x70] sm:$0xff]
    %v116 = vld [vmem:[#allocation8 + $0x78] sm:$0xff]
    %v117 = vld [vmem:[%s4] sm:$0x1]
    %v119 = vlaneseq
    %v120 = vshrl.u32 %v119, 7
    %v121 = vsub.s32 0, %v120
    %v122 = vrot.slane %v117, %v121
    %124 = vmatprep.subr.mxu0 0.0
    %125 = vmatpush1.msra.mxu0 %v101
    %126 = vmatprep.subr.mxu0 0.0
    %127 = vmatpush1.msra.mxu0 %v102
    %128 = vmatprep.subr.mxu0 0.0
    %129 = vmatpush1.msra.mxu0 %v103
    %130 = vmatprep.subr.mxu0 0.0
    %131 = vmatpush1.msra.mxu0 %v104
    %132 = vmatprep.subr.mxu0 0.0
    %133 = vmatpush1.msra.mxu0 %v105
    %134 = vmatprep.subr.mxu0 0.0
    %135 = vmatpush1.msra.mxu0 %v106
    %136 = vmatprep.subr.mxu0 0.0
    %137 = vmatpush1.msra.mxu0 %v107
    %138 = vmatprep.subr.mxu0 0.0
    %139 = vmatpush1.msra.mxu0 %v108
    %140 = vmatprep.subr.mxu0 0.0
    %141 = vmatpush1.msra.mxu0 %v109
    %142 = vmatprep.subr.mxu0 0.0
    %143 = vmatpush1.msra.mxu0 %v110
    %144 = vmatprep.subr.mxu0 0.0
    %145 = vmatpush1.msra.mxu0 %v111
    %146 = vmatprep.subr.mxu0 0.0
    %147 = vmatpush1.msra.mxu0 %v112
    %148 = vmatprep.subr.mxu0 0.0
    %149 = vmatpush1.msra.mxu0 %v113
    %150 = vmatprep.subr.mxu0 0.0
    %151 = vmatpush1.msra.mxu0 %v114
    %152 = vmatprep.subr.mxu0 0.0
    %153 = vmatpush1.msra.mxu0 %v115
    %154 = vmatprep.subr.mxu0 0.0
    %155 = vmatpush1.msra.mxu0 %v116
    %156 = vmatprep.subr.mxu0 0.0
    %157 = vmatpush1.msra.mxu0 0.0
    %158 = vmatprep.subr.mxu0 0.0
    %159 = vmatpush1.msra.mxu0 0.0
    %160 = vmatprep.subr.mxu0 0.0
    %161 = vmatpush1.msra.mxu0 0.0
    %162 = vmatprep.subr.mxu0 0.0
    %163 = vmatpush1.msra.mxu0 0.0
    %164 = vmatprep.subr.mxu0 0.0
    %165 = vmatpush1.msra.mxu0 0.0
    %166 = vmatprep.subr.mxu0 0.0
    %167 = vmatpush1.msra.mxu0 0.0
    %168 = vmatprep.subr.mxu0 0.0
    %169 = vmatpush1.msra.mxu0 0.0
    %170 = vmatprep.subr.mxu0 0.0
    %171 = vmatpush1.msra.mxu0 0.0
    %172 = vmatprep.subr.mxu0 0.0
    %173 = vmatpush1.msra.mxu0 0.0
    %174 = vmatprep.subr.mxu0 0.0
    %175 = vmatpush1.msra.mxu0 0.0
    %176 = vmatprep.subr.mxu0 0.0
    %177 = vmatpush1.msra.mxu0 0.0
    %178 = vmatprep.subr.mxu0 0.0
    %179 = vmatpush1.msra.mxu0 0.0
    %180 = vmatprep.subr.mxu0 0.0
    %181 = vmatpush1.msra.mxu0 0.0
    %182 = vmatprep.subr.mxu0 0.0
    %183 = vmatpush1.msra.mxu0 0.0
    %184 = vmatprep.subr.mxu0 0.0
    %185 = vmatpush1.msra.mxu0 0.0
    %186 = vmatprep.subr.mxu0 0.0
    %187 = vmatpush1.msra.mxu0 0.0
    %188 = vmatprep.mubr.f32.mxu0 0.0
    %189 = vmatmul.mubr.f32.gmra.mrb[0].mxu0 %v93
    %v190 = vpop.f32.mrb[0].mxu0
    %v191 = vadd.f32 %v122, %v190
    %v192 = vpop.f32.mrb[0].mxu0
    %193 = vmatprep.mubr.f32.mxu0 0.0
    %194 = vmatmul.mubr.f32.gmra.mrb[0].mxu0 %v94
    %v195 = vpop.f32.mrb[0].mxu0
    %v196 = vadd.f32 %v122, %v195
    %v197 = vpop.f32.mrb[0].mxu0
    %198 = vmatprep.mubr.f32.mxu0 0.0
    %199 = vmatmul.mubr.f32.gmra.mrb[0].mxu0 %v95
    %v200 = vpop.f32.mrb[0].mxu0
    %v201 = vadd.f32 %v122, %v200
    %v202 = vpop.f32.mrb[0].mxu0
    %203 = vmatprep.mubr.f32.mxu0 0.0
    %204 = vmatmul.mubr.f32.gmra.mrb[0].mxu0 %v96
    %v205 = vpop.f32.mrb[0].mxu0
    %v206 = vadd.f32 %v122, %v205
    %v207 = vpop.f32.mrb[0].mxu0
    %208 = vmatprep.mubr.f32.mxu0 0.0
    %209 = vmatmul.mubr.f32.gmra.mrb[0].mxu0 %v97
    %v210 = vpop.f32.mrb[0].mxu0
    %v211 = vadd.f32 %v122, %v210
    %v212 = vpop.f32.mrb[0].mxu0
    %213 = vmatprep.mubr.f32.mxu0 0.0
    %214 = vmatmul.mubr.f32.gmra.mrb[0].mxu0 %v98
    %v215 = vpop.f32.mrb[0].mxu0
    %v216 = vadd.f32 %v122, %v215
    %v217 = vpop.f32.mrb[0].mxu0
    %218 = vmatprep.mubr.f32.mxu0 0.0
    %219 = vmatmul.mubr.f32.gmra.mrb[0].mxu0 %v99
    %v220 = vpop.f32.mrb[0].mxu0
    %v221 = vadd.f32 %v122, %v220
    %v222 = vpop.f32.mrb[0].mxu0
    %223 = vmatprep.mubr.f32.mxu0 0.0
    %224 = vmatmul.mubr.f32.gmra.mrb[0].mxu0 %v100
    %v225 = vpop.f32.mrb[0].mxu0
    %v226 = vadd.f32 %v122, %v225
    %v227 = vpop.f32.mrb[0].mxu0
    %228 = vdwg.mxu0
    %229 = vst [vmem:[#allocation2] sm:$0xff] %v191
    %s230 = scalar_lea.vmem [#allocation2], 8
    %231 = vst [vmem:[%s230] sm:$0xff] %v196
    %s232 = scalar_lea.vmem [#allocation2], 16
    %233 = vst [vmem:[%s232] sm:$0xff] %v201
    %s234 = scalar_lea.vmem [#allocation2], 24
    %235 = vst [vmem:[%s234] sm:$0xff] %v206
    %s236 = scalar_lea.vmem [#allocation2], 32
    %237 = vst [vmem:[%s236] sm:$0xff] %v211
    %s238 = scalar_lea.vmem [#allocation2], 40
    %239 = vst [vmem:[%s238] sm:$0xff] %v216
    %s240 = scalar_lea.vmem [#allocation2], 48
    %241 = vst [vmem:[%s240] sm:$0xff] %v221
    %s242 = scalar_lea.vmem [#allocation2], 56
    %243 = vst [vmem:[%s242] sm:$0xff] %v226
    %v244 = vld [vmem:[#allocation6] sm:$0xff]
    %v245 = vld [vmem:[#allocation2] sm:$0xff]
    %v246 = vld [vmem:[#allocation9] sm:$0xff]
    %v247 = vld [vmem:[#allocation9 + $0x8] sm:$0xff]
    %v248 = vld [vmem:[#allocation9 + $0x10] sm:$0xff]
    %v249 = vld [vmem:[#allocation9 + $0x18] sm:$0xff]
    %v250 = vld [vmem:[#allocation9 + $0x20] sm:$0xff]
    %v251 = vld [vmem:[#allocation9 + $0x28] sm:$0xff]
    %v252 = vld [vmem:[#allocation9 + $0x30] sm:$0xff]
    %v253 = vld [vmem:[#allocation9 + $0x38] sm:$0xff]
    %v254 = vld [vmem:[#allocation9 + $0x40] sm:$0xff]
    %v255 = vld [vmem:[#allocation9 + $0x48] sm:$0xff]
    %v256 = vld [vmem:[#allocation9 + $0x50] sm:$0xff]
    %v257 = vld [vmem:[#allocation9 + $0x58] sm:$0xff]
    %v258 = vld [vmem:[#allocation9 + $0x60] sm:$0xff]
    %v259 = vld [vmem:[#allocation9 + $0x68] sm:$0xff]
    %v260 = vld [vmem:[#allocation9 + $0x70] sm:$0xff]
    %v261 = vld [vmem:[#allocation9 + $0x78] sm:$0xff]
    %262 = vmatprep.subr.mxu0 0.0
    %263 = vmatpush1.msra.mxu0 %v246
    %264 = vmatprep.subr.mxu0 0.0
    %265 = vmatpush1.msra.mxu0 %v247
    %266 = vmatprep.subr.mxu0 0.0
    %267 = vmatpush1.msra.mxu0 %v248
    %268 = vmatprep.subr.mxu0 0.0
    %269 = vmatpush1.msra.mxu0 %v249
    %270 = vmatprep.subr.mxu0 0.0
    %271 = vmatpush1.msra.mxu0 %v250
    %272 = vmatprep.subr.mxu0 0.0
    %273 = vmatpush1.msra.mxu0 %v251
    %274 = vmatprep.subr.mxu0 0.0
    %275 = vmatpush1.msra.mxu0 %v252
    %276 = vmatprep.subr.mxu0 0.0
    %277 = vmatpush1.msra.mxu0 %v253
    %278 = vmatprep.subr.mxu0 0.0
    %279 = vmatpush1.msra.mxu0 %v254
    %280 = vmatprep.subr.mxu0 0.0
    %281 = vmatpush1.msra.mxu0 %v255
    %282 = vmatprep.subr.mxu0 0.0
    %283 = vmatpush1.msra.mxu0 %v256
    %284 = vmatprep.subr.mxu0 0.0
    %285 = vmatpush1.msra.mxu0 %v257
    %286 = vmatprep.subr.mxu0 0.0
    %287 = vmatpush1.msra.mxu0 %v258
    %288 = vmatprep.subr.mxu0 0.0
    %289 = vmatpush1.msra.mxu0 %v259
    %290 = vmatprep.subr.mxu0 0.0
    %291 = vmatpush1.msra.mxu0 %v260
    %292 = vmatprep.subr.mxu0 0.0
    %293 = vmatpush1.msra.mxu0 %v261
    %294 = vmatprep.subr.mxu0 0.0
    %295 = vmatpush1.msra.mxu0 0.0
    %296 = vmatprep.subr.mxu0 0.0
    %297 = vmatpush1.msra.mxu0 0.0
    %298 = vmatprep.subr.mxu0 0.0
    %299 = vmatpush1.msra.mxu0 0.0
    %300 = vmatprep.subr.mxu0 0.0
    %301 = vmatpush1.msra.mxu0 0.0
    %302 = vmatprep.subr.mxu0 0.0
    %303 = vmatpush1.msra.mxu0 0.0
    %304 = vmatprep.subr.mxu0 0.0
    %305 = vmatpush1.msra.mxu0 0.0
    %306 = vmatprep.subr.mxu0 0.0
    %307 = vmatpush1.msra.mxu0 0.0
    %308 = vmatprep.subr.mxu0 0.0
    %309 = vmatpush1.msra.mxu0 0.0
    %310 = vmatprep.subr.mxu0 0.0
    %311 = vmatpush1.msra.mxu0 0.0
    %312 = vmatprep.subr.mxu0 0.0
    %313 = vmatpush1.msra.mxu0 0.0
    %314 = vmatprep.subr.mxu0 0.0
    %315 = vmatpush1.msra.mxu0 0.0
    %316 = vmatprep.subr.mxu0 0.0
    %317 = vmatpush1.msra.mxu0 0.0
    %318 = vmatprep.subr.mxu0 0.0
    %319 = vmatpush1.msra.mxu0 0.0
    %320 = vmatprep.subr.mxu0 0.0
    %321 = vmatpush1.msra.mxu0 0.0
    %322 = vmatprep.subr.mxu0 0.0
    %323 = vmatpush1.msra.mxu0 0.0
    %324 = vmatprep.subr.mxu0 0.0
    %325 = vmatpush1.msra.mxu0 0.0
    %326 = vmatprep.mubr.f32.mxu0 0.0
    %327 = vmatmul.mubr.f32.gmra.mrb[0].mxu0 %v244
    %v328 = vpop.f32.mrb[0].mxu0
    %v329 = vadd.f32 0.0, %v328
    %v330 = vpop.f32.mrb[0].mxu0
    %331 = vdwg.mxu0
    %v332 = vadd.f32 %v245, %v329
    %v333 = vtanh.pop %v332
    %v334 = vld [vmem:[%s230] sm:$0xff]
    %335 = vmatprep.subr.mxu0 0.0
    %336 = vmatpush1.msra.mxu0 %v246
    %337 = vmatprep.subr.mxu0 0.0
    %338 = vmatpush1.msra.mxu0 %v247
    %339 = vmatprep.subr.mxu0 0.0
    %340 = vmatpush1.msra.mxu0 %v248
    %341 = vmatprep.subr.mxu0 0.0
    %342 = vmatpush1.msra.mxu0 %v249
    %343 = vmatprep.subr.mxu0 0.0
    %344 = vmatpush1.msra.mxu0 %v250
    %345 = vmatprep.subr.mxu0 0.0
    %346 = vmatpush1.msra.mxu0 %v251
    %347 = vmatprep.subr.mxu0 0.0
    %348 = vmatpush1.msra.mxu0 %v252
    %349 = vmatprep.subr.mxu0 0.0
    %350 = vmatpush1.msra.mxu0 %v253
    %351 = vmatprep.subr.mxu0 0.0
    %352 = vmatpush1.msra.mxu0 %v254
    %353 = vmatprep.subr.mxu0 0.0
    %354 = vmatpush1.msra.mxu0 %v255
    %355 = vmatprep.subr.mxu0 0.0
    %356 = vmatpush1.msra.mxu0 %v256
    %357 = vmatprep.subr.mxu0 0.0
    %358 = vmatpush1.msra.mxu0 %v257
    %359 = vmatprep.subr.mxu0 0.0
    %360 = vmatpush1.msra.mxu0 %v258
    %361 = vmatprep.subr.mxu0 0.0
    %362 = vmatpush1.msra.mxu0 %v259
    %363 = vmatprep.subr.mxu0 0.0
    %364 = vmatpush1.msra.mxu0 %v260
    %365 = vmatprep.subr.mxu0 0.0
    %366 = vmatpush1.msra.mxu0 %v261
    %367 = vmatprep.subr.mxu0 0.0
    %368 = vmatpush1.msra.mxu0 0.0
    %369 = vmatprep.subr.mxu0 0.0
    %370 = vmatpush1.msra.mxu0 0.0
    %371 = vmatprep.subr.mxu0 0.0
    %372 = vmatpush1.msra.mxu0 0.0
    %373 = vmatprep.subr.mxu0 0.0
    %374 = vmatpush1.msra.mxu0 0.0
    %375 = vmatprep.subr.mxu0 0.0
    %376 = vmatpush1.msra.mxu0 0.0
    %377 = vmatprep.subr.mxu0 0.0
    %378 = vmatpush1.msra.mxu0 0.0
    %379 = vmatprep.subr.mxu0 0.0
    %380 = vmatpush1.msra.mxu0 0.0
    %381 = vmatprep.subr.mxu0 0.0
    %382 = vmatpush1.msra.mxu0 0.0
    %383 = vmatprep.subr.mxu0 0.0
    %384 = vmatpush1.msra.mxu0 0.0
    %385 = vmatprep.subr.mxu0 0.0
    %386 = vmatpush1.msra.mxu0 0.0
    %387 = vmatprep.subr.mxu0 0.0
    %388 = vmatpush1.msra.mxu0 0.0
    %389 = vmatprep.subr.mxu0 0.0
    %390 = vmatpush1.msra.mxu0 0.0
    %391 = vmatprep.subr.mxu0 0.0
    %392 = vmatpush1.msra.mxu0 0.0
    %393 = vmatprep.subr.mxu0 0.0
    %394 = vmatpush1.msra.mxu0 0.0
    %395 = vmatprep.subr.mxu0 0.0
    %396 = vmatpush1.msra.mxu0 0.0
    %397 = vmatprep.subr.mxu0 0.0
    %398 = vmatpush1.msra.mxu0 0.0
    %399 = vmatprep.mubr.f32.mxu0 0.0
    %400 = vmatmul.mubr.f32.gmra.mrb[0].mxu0 %v333
    %v401 = vpop.f32.mrb[0].mxu0
    %v402 = vadd.f32 0.0, %v401
    %v403 = vpop.f32.mrb[0].mxu0
    %404 = vdwg.mxu0
    %v405 = vadd.f32 %v334, %v402
    %v406 = vtanh.pop %v405
    %v407 = vld [vmem:[%s232] sm:$0xff]
    %408 = vmatprep.subr.mxu0 0.0
    %409 = vmatpush1.msra.mxu0 %v246
    %410 = vmatprep.subr.mxu0 0.0
    %411 = vmatpush1.msra.mxu0 %v247
    %412 = vmatprep.subr.mxu0 0.0
    %413 = vmatpush1.msra.mxu0 %v248
    %414 = vmatprep.subr.mxu0 0.0
    %415 = vmatpush1.msra.mxu0 %v249
    %416 = vmatprep.subr.mxu0 0.0
    %417 = vmatpush1.msra.mxu0 %v250
    %418 = vmatprep.subr.mxu0 0.0
    %419 = vmatpush1.msra.mxu0 %v251
    %420 = vmatprep.subr.mxu0 0.0
    %421 = vmatpush1.msra.mxu0 %v252
    %422 = vmatprep.subr.mxu0 0.0
    %423 = vmatpush1.msra.mxu0 %v253
    %424 = vmatprep.subr.mxu0 0.0
    %425 = vmatpush1.msra.mxu0 %v254
    %426 = vmatprep.subr.mxu0 0.0
    %427 = vmatpush1.msra.mxu0 %v255
    %428 = vmatprep.subr.mxu0 0.0
    %429 = vmatpush1.msra.mxu0 %v256
    %430 = vmatprep.subr.mxu0 0.0
    %431 = vmatpush1.msra.mxu0 %v257
    %432 = vmatprep.subr.mxu0 0.0
    %433 = vmatpush1.msra.mxu0 %v258
    %434 = vmatprep.subr.mxu0 0.0
    %435 = vmatpush1.msra.mxu0 %v259
    %436 = vmatprep.subr.mxu0 0.0
    %437 = vmatpush1.msra.mxu0 %v260
    %438 = vmatprep.subr.mxu0 0.0
    %439 = vmatpush1.msra.mxu0 %v261
    %440 = vmatprep.subr.mxu0 0.0
    %441 = vmatpush1.msra.mxu0 0.0
    %442 = vmatprep.subr.mxu0 0.0
    %443 = vmatpush1.msra.mxu0 0.0
    %444 = vmatprep.subr.mxu0 0.0
    %445 = vmatpush1.msra.mxu0 0.0
    %446 = vmatprep.subr.mxu0 0.0
    %447 = vmatpush1.msra.mxu0 0.0
    %448 = vmatprep.subr.mxu0 0.0
    %449 = vmatpush1.msra.mxu0 0.0
    %450 = vmatprep.subr.mxu0 0.0
    %451 = vmatpush1.msra.mxu0 0.0
    %452 = vmatprep.subr.mxu0 0.0
    %453 = vmatpush1.msra.mxu0 0.0
    %454 = vmatprep.subr.mxu0 0.0
    %455 = vmatpush1.msra.mxu0 0.0
    %456 = vmatprep.subr.mxu0 0.0
    %457 = vmatpush1.msra.mxu0 0.0
    %458 = vmatprep.subr.mxu0 0.0
    %459 = vmatpush1.msra.mxu0 0.0
    %460 = vmatprep.subr.mxu0 0.0
    %461 = vmatpush1.msra.mxu0 0.0
    %462 = vmatprep.subr.mxu0 0.0
    %463 = vmatpush1.msra.mxu0 0.0
    %464 = vmatprep.subr.mxu0 0.0
    %465 = vmatpush1.msra.mxu0 0.0
    %466 = vmatprep.subr.mxu0 0.0
    %467 = vmatpush1.msra.mxu0 0.0
    %468 = vmatprep.subr.mxu0 0.0
    %469 = vmatpush1.msra.mxu0 0.0
    %470 = vmatprep.subr.mxu0 0.0
    %471 = vmatpush1.msra.mxu0 0.0
    %472 = vmatprep.mubr.f32.mxu0 0.0
    %473 = vmatmul.mubr.f32.gmra.mrb[0].mxu0 %v406
    %v474 = vpop.f32.mrb[0].mxu0
    %v475 = vadd.f32 0.0, %v474
    %v476 = vpop.f32.mrb[0].mxu0
    %477 = vdwg.mxu0
    %v478 = vadd.f32 %v407, %v475
    %v479 = vtanh.pop %v478
    %v480 = vld [vmem:[%s234] sm:$0xff]
    %481 = vmatprep.subr.mxu0 0.0
    %482 = vmatpush1.msra.mxu0 %v246
    %483 = vmatprep.subr.mxu0 0.0
    %484 = vmatpush1.msra.mxu0 %v247
    %485 = vmatprep.subr.mxu0 0.0
    %486 = vmatpush1.msra.mxu0 %v248
    %487 = vmatprep.subr.mxu0 0.0
    %488 = vmatpush1.msra.mxu0 %v249
    %489 = vmatprep.subr.mxu0 0.0
    %490 = vmatpush1.msra.mxu0 %v250
    %491 = vmatprep.subr.mxu0 0.0
    %492 = vmatpush1.msra.mxu0 %v251
    %493 = vmatprep.subr.mxu0 0.0
    %494 = vmatpush1.msra.mxu0 %v252
    %495 = vmatprep.subr.mxu0 0.0
    %496 = vmatpush1.msra.mxu0 %v253
    %497 = vmatprep.subr.mxu0 0.0
    %498 = vmatpush1.msra.mxu0 %v254
    %499 = vmatprep.subr.mxu0 0.0
    %500 = vmatpush1.msra.mxu0 %v255
    %501 = vmatprep.subr.mxu0 0.0
    %502 = vmatpush1.msra.mxu0 %v256
    %503 = vmatprep.subr.mxu0 0.0
    %504 = vmatpush1.msra.mxu0 %v257
    %505 = vmatprep.subr.mxu0 0.0
    %506 = vmatpush1.msra.mxu0 %v258
    %507 = vmatprep.subr.mxu0 0.0
    %508 = vmatpush1.msra.mxu0 %v259
    %509 = vmatprep.subr.mxu0 0.0
    %510 = vmatpush1.msra.mxu0 %v260
    %511 = vmatprep.subr.mxu0 0.0
    %512 = vmatpush1.msra.mxu0 %v261
    %513 = vmatprep.subr.mxu0 0.0
    %514 = vmatpush1.msra.mxu0 0.0
    %515 = vmatprep.subr.mxu0 0.0
    %516 = vmatpush1.msra.mxu0 0.0
    %517 = vmatprep.subr.mxu0 0.0
    %518 = vmatpush1.msra.mxu0 0.0
    %519 = vmatprep.subr.mxu0 0.0
    %520 = vmatpush1.msra.mxu0 0.0
    %521 = vmatprep.subr.mxu0 0.0
    %522 = vmatpush1.msra.mxu0 0.0
    %523 = vmatprep.subr.mxu0 0.0
    %524 = vmatpush1.msra.mxu0 0.0
    %525 = vmatprep.subr.mxu0 0.0
    %526 = vmatpush1.msra.mxu0 0.0
    %527 = vmatprep.subr.mxu0 0.0
    %528 = vmatpush1.msra.mxu0 0.0
    %529 = vmatprep.subr.mxu0 0.0
    %530 = vmatpush1.msra.mxu0 0.0
    %531 = vmatprep.subr.mxu0 0.0
    %532 = vmatpush1.msra.mxu0 0.0
    %533 = vmatprep.subr.mxu0 0.0
    %534 = vmatpush1.msra.mxu0 0.0
    %535 = vmatprep.subr.mxu0 0.0
    %536 = vmatpush1.msra.mxu0 0.0
    %537 = vmatprep.subr.mxu0 0.0
    %538 = vmatpush1.msra.mxu0 0.0
    %539 = vmatprep.subr.mxu0 0.0
    %540 = vmatpush1.msra.mxu0 0.0
    %541 = vmatprep.subr.mxu0 0.0
    %542 = vmatpush1.msra.mxu0 0.0
    %543 = vmatprep.subr.mxu0 0.0
    %544 = vmatpush1.msra.mxu0 0.0
    %545 = vmatprep.mubr.f32.mxu0 0.0
    %546 = vmatmul.mubr.f32.gmra.mrb[0].mxu0 %v479
    %v547 = vpop.f32.mrb[0].mxu0
    %v548 = vadd.f32 0.0, %v547
    %v549 = vpop.f32.mrb[0].mxu0
    %550 = vdwg.mxu0
    %v551 = vadd.f32 %v480, %v548
    %v552 = vtanh.pop %v551
    %v553 = vld [vmem:[%s236] sm:$0xff]
    %554 = vmatprep.subr.mxu0 0.0
    %555 = vmatpush1.msra.mxu0 %v246
    %556 = vmatprep.subr.mxu0 0.0
    %557 = vmatpush1.msra.mxu0 %v247
    %558 = vmatprep.subr.mxu0 0.0
    %559 = vmatpush1.msra.mxu0 %v248
    %560 = vmatprep.subr.mxu0 0.0
    %561 = vmatpush1.msra.mxu0 %v249
    %562 = vmatprep.subr.mxu0 0.0
    %563 = vmatpush1.msra.mxu0 %v250
    %564 = vmatprep.subr.mxu0 0.0
    %565 = vmatpush1.msra.mxu0 %v251
    %566 = vmatprep.subr.mxu0 0.0
    %567 = vmatpush1.msra.mxu0 %v252
    %568 = vmatprep.subr.mxu0 0.0
    %569 = vmatpush1.msra.mxu0 %v253
    %570 = vmatprep.subr.mxu0 0.0
    %571 = vmatpush1.msra.mxu0 %v254
    %572 = vmatprep.subr.mxu0 0.0
    %573 = vmatpush1.msra.mxu0 %v255
    %574 = vmatprep.subr.mxu0 0.0
    %575 = vmatpush1.msra.mxu0 %v256
    %576 = vmatprep.subr.mxu0 0.0
    %577 = vmatpush1.msra.mxu0 %v257
    %578 = vmatprep.subr.mxu0 0.0
    %579 = vmatpush1.msra.mxu0 %v258
    %580 = vmatprep.subr.mxu0 0.0
    %581 = vmatpush1.msra.mxu0 %v259
    %582 = vmatprep.subr.mxu0 0.0
    %583 = vmatpush1.msra.mxu0 %v260
    %584 = vmatprep.subr.mxu0 0.0
    %585 = vmatpush1.msra.mxu0 %v261
    %586 = vmatprep.subr.mxu0 0.0
    %587 = vmatpush1.msra.mxu0 0.0
    %588 = vmatprep.subr.mxu0 0.0
    %589 = vmatpush1.msra.mxu0 0.0
    %590 = vmatprep.subr.mxu0 0.0
    %591 = vmatpush1.msra.mxu0 0.0
    %592 = vmatprep.subr.mxu0 0.0
    %593 = vmatpush1.msra.mxu0 0.0
    %594 = vmatprep.subr.mxu0 0.0
    %595 = vmatpush1.msra.mxu0 0.0
    %596 = vmatprep.subr.mxu0 0.0
    %597 = vmatpush1.msra.mxu0 0.0
    %598 = vmatprep.subr.mxu0 0.0
    %599 = vmatpush1.msra.mxu0 0.0
    %600 = vmatprep.subr.mxu0 0.0
    %601 = vmatpush1.msra.mxu0 0.0
    %602 = vmatprep.subr.mxu0 0.0
    %603 = vmatpush1.msra.mxu0 0.0
    %604 = vmatprep.subr.mxu0 0.0
    %605 = vmatpush1.msra.mxu0 0.0
    %606 = vmatprep.subr.mxu0 0.0
    %607 = vmatpush1.msra.mxu0 0.0
    %608 = vmatprep.subr.mxu0 0.0
    %609 = vmatpush1.msra.mxu0 0.0
    %610 = vmatprep.subr.mxu0 0.0
    %611 = vmatpush1.msra.mxu0 0.0
    %612 = vmatprep.subr.mxu0 0.0
    %613 = vmatpush1.msra.mxu0 0.0
    %614 = vmatprep.subr.mxu0 0.0
    %615 = vmatpush1.msra.mxu0 0.0
    %616 = vmatprep.subr.mxu0 0.0
    %617 = vmatpush1.msra.mxu0 0.0
    %618 = vmatprep.mubr.f32.mxu0 0.0
    %619 = vmatmul.mubr.f32.gmra.mrb[0].mxu0 %v552
    %v620 = vpop.f32.mrb[0].mxu0
    %v621 = vadd.f32 0.0, %v620
    %v622 = vpop.f32.mrb[0].mxu0
    %623 = vdwg.mxu0
    %v624 = vadd.f32 %v553, %v621
    %v625 = vtanh.pop %v624
    %v626 = vld [vmem:[%s238] sm:$0xff]
    %627 = vmatprep.subr.mxu0 0.0
    %628 = vmatpush1.msra.mxu0 %v246
    %629 = vmatprep.subr.mxu0 0.0
    %630 = vmatpush1.msra.mxu0 %v247
    %631 = vmatprep.subr.mxu0 0.0
    %632 = vmatpush1.msra.mxu0 %v248
    %633 = vmatprep.subr.mxu0 0.0
    %634 = vmatpush1.msra.mxu0 %v249
    %635 = vmatprep.subr.mxu0 0.0
    %636 = vmatpush1.msra.mxu0 %v250
    %637 = vmatprep.subr.mxu0 0.0
    %638 = vmatpush1.msra.mxu0 %v251
    %639 = vmatprep.subr.mxu0 0.0
    %640 = vmatpush1.msra.mxu0 %v252
    %641 = vmatprep.subr.mxu0 0.0
    %642 = vmatpush1.msra.mxu0 %v253
    %643 = vmatprep.subr.mxu0 0.0
    %644 = vmatpush1.msra.mxu0 %v254
    %645 = vmatprep.subr.mxu0 0.0
    %646 = vmatpush1.msra.mxu0 %v255
    %647 = vmatprep.subr.mxu0 0.0
    %648 = vmatpush1.msra.mxu0 %v256
    %649 = vmatprep.subr.mxu0 0.0
    %650 = vmatpush1.msra.mxu0 %v257
    %651 = vmatprep.subr.mxu0 0.0
    %652 = vmatpush1.msra.mxu0 %v258
    %653 = vmatprep.subr.mxu0 0.0
    %654 = vmatpush1.msra.mxu0 %v259
    %655 = vmatprep.subr.mxu0 0.0
    %656 = vmatpush1.msra.mxu0 %v260
    %657 = vmatprep.subr.mxu0 0.0
    %658 = vmatpush1.msra.mxu0 %v261
    %659 = vmatprep.subr.mxu0 0.0
    %660 = vmatpush1.msra.mxu0 0.0
    %661 = vmatprep.subr.mxu0 0.0
    %662 = vmatpush1.msra.mxu0 0.0
    %663 = vmatprep.subr.mxu0 0.0
    %664 = vmatpush1.msra.mxu0 0.0
    %665 = vmatprep.subr.mxu0 0.0
    %666 = vmatpush1.msra.mxu0 0.0
    %667 = vmatprep.subr.mxu0 0.0
    %668 = vmatpush1.msra.mxu0 0.0
    %669 = vmatprep.subr.mxu0 0.0
    %670 = vmatpush1.msra.mxu0 0.0
    %671 = vmatprep.subr.mxu0 0.0
    %672 = vmatpush1.msra.mxu0 0.0
    %673 = vmatprep.subr.mxu0 0.0
    %674 = vmatpush1.msra.mxu0 0.0
    %675 = vmatprep.subr.mxu0 0.0
    %676 = vmatpush1.msra.mxu0 0.0
    %677 = vmatprep.subr.mxu0 0.0
    %678 = vmatpush1.msra.mxu0 0.0
    %679 = vmatprep.subr.mxu0 0.0
    %680 = vmatpush1.msra.mxu0 0.0
    %681 = vmatprep.subr.mxu0 0.0
    %682 = vmatpush1.msra.mxu0 0.0
    %683 = vmatprep.subr.mxu0 0.0
    %684 = vmatpush1.msra.mxu0 0.0
    %685 = vmatprep.subr.mxu0 0.0
    %686 = vmatpush1.msra.mxu0 0.0
    %687 = vmatprep.subr.mxu0 0.0
    %688 = vmatpush1.msra.mxu0 0.0
    %689 = vmatprep.subr.mxu0 0.0
    %690 = vmatpush1.msra.mxu0 0.0
    %691 = vmatprep.mubr.f32.mxu0 0.0
    %692 = vmatmul.mubr.f32.gmra.mrb[0].mxu0 %v625
    %v693 = vpop.f32.mrb[0].mxu0
    %v694 = vadd.f32 0.0, %v693
    %v695 = vpop.f32.mrb[0].mxu0
    %696 = vdwg.mxu0
    %v697 = vadd.f32 %v626, %v694
    %v698 = vtanh.pop %v697
    %v699 = vld [vmem:[%s240] sm:$0xff]
    %700 = vmatprep.subr.mxu0 0.0
    %701 = vmatpush1.msra.mxu0 %v246
    %702 = vmatprep.subr.mxu0 0.0
    %703 = vmatpush1.msra.mxu0 %v247
    %704 = vmatprep.subr.mxu0 0.0
    %705 = vmatpush1.msra.mxu0 %v248
    %706 = vmatprep.subr.mxu0 0.0
    %707 = vmatpush1.msra.mxu0 %v249
    %708 = vmatprep.subr.mxu0 0.0
    %709 = vmatpush1.msra.mxu0 %v250
    %710 = vmatprep.subr.mxu0 0.0
    %711 = vmatpush1.msra.mxu0 %v251
    %712 = vmatprep.subr.mxu0 0.0
    %713 = vmatpush1.msra.mxu0 %v252
    %714 = vmatprep.subr.mxu0 0.0
    %715 = vmatpush1.msra.mxu0 %v253
    %716 = vmatprep.subr.mxu0 0.0
    %717 = vmatpush1.msra.mxu0 %v254
    %718 = vmatprep.subr.mxu0 0.0
    %719 = vmatpush1.msra.mxu0 %v255
    %720 = vmatprep.subr.mxu0 0.0
    %721 = vmatpush1.msra.mxu0 %v256
    %722 = vmatprep.subr.mxu0 0.0
    %723 = vmatpush1.msra.mxu0 %v257
    %724 = vmatprep.subr.mxu0 0.0
    %725 = vmatpush1.msra.mxu0 %v258
    %726 = vmatprep.subr.mxu0 0.0
    %727 = vmatpush1.msra.mxu0 %v259
    %728 = vmatprep.subr.mxu0 0.0
    %729 = vmatpush1.msra.mxu0 %v260
    %730 = vmatprep.subr.mxu0 0.0
    %731 = vmatpush1.msra.mxu0 %v261
    %732 = vmatprep.subr.mxu0 0.0
    %733 = vmatpush1.msra.mxu0 0.0
    %734 = vmatprep.subr.mxu0 0.0
    %735 = vmatpush1.msra.mxu0 0.0
    %736 = vmatprep.subr.mxu0 0.0
    %737 = vmatpush1.msra.mxu0 0.0
    %738 = vmatprep.subr.mxu0 0.0
    %739 = vmatpush1.msra.mxu0 0.0
    %740 = vmatprep.subr.mxu0 0.0
    %741 = vmatpush1.msra.mxu0 0.0
    %742 = vmatprep.subr.mxu0 0.0
    %743 = vmatpush1.msra.mxu0 0.0
    %744 = vmatprep.subr.mxu0 0.0
    %745 = vmatpush1.msra.mxu0 0.0
    %746 = vmatprep.subr.mxu0 0.0
    %747 = vmatpush1.msra.mxu0 0.0
    %748 = vmatprep.subr.mxu0 0.0
    %749 = vmatpush1.msra.mxu0 0.0
    %750 = vmatprep.subr.mxu0 0.0
    %751 = vmatpush1.msra.mxu0 0.0
    %752 = vmatprep.subr.mxu0 0.0
    %753 = vmatpush1.msra.mxu0 0.0
    %754 = vmatprep.subr.mxu0 0.0
    %755 = vmatpush1.msra.mxu0 0.0
    %756 = vmatprep.subr.mxu0 0.0
    %757 = vmatpush1.msra.mxu0 0.0
    %758 = vmatprep.subr.mxu0 0.0
    %759 = vmatpush1.msra.mxu0 0.0
    %760 = vmatprep.subr.mxu0 0.0
    %761 = vmatpush1.msra.mxu0 0.0
    %762 = vmatprep.subr.mxu0 0.0
    %763 = vmatpush1.msra.mxu0 0.0
    %764 = vmatprep.mubr.f32.mxu0 0.0
    %765 = vmatmul.mubr.f32.gmra.mrb[0].mxu0 %v698
    %v766 = vpop.f32.mrb[0].mxu0
    %v767 = vadd.f32 0.0, %v766
    %v768 = vpop.f32.mrb[0].mxu0
    %769 = vdwg.mxu0
    %v770 = vadd.f32 %v699, %v767
    %v771 = vtanh.pop %v770
    %v772 = vld [vmem:[%s242] sm:$0xff]
    %773 = vmatprep.subr.mxu0 0.0
    %774 = vmatpush1.msra.mxu0 %v246
    %775 = vmatprep.subr.mxu0 0.0
    %776 = vmatpush1.msra.mxu0 %v247
    %777 = vmatprep.subr.mxu0 0.0
    %778 = vmatpush1.msra.mxu0 %v248
    %779 = vmatprep.subr.mxu0 0.0
    %780 = vmatpush1.msra.mxu0 %v249
    %781 = vmatprep.subr.mxu0 0.0
    %782 = vmatpush1.msra.mxu0 %v250
    %783 = vmatprep.subr.mxu0 0.0
    %784 = vmatpush1.msra.mxu0 %v251
    %785 = vmatprep.subr.mxu0 0.0
    %786 = vmatpush1.msra.mxu0 %v252
    %787 = vmatprep.subr.mxu0 0.0
    %788 = vmatpush1.msra.mxu0 %v253
    %789 = vmatprep.subr.mxu0 0.0
    %790 = vmatpush1.msra.mxu0 %v254
    %791 = vmatprep.subr.mxu0 0.0
    %792 = vmatpush1.msra.mxu0 %v255
    %793 = vmatprep.subr.mxu0 0.0
    %794 = vmatpush1.msra.mxu0 %v256
    %795 = vmatprep.subr.mxu0 0.0
    %796 = vmatpush1.msra.mxu0 %v257
    %797 = vmatprep.subr.mxu0 0.0
    %798 = vmatpush1.msra.mxu0 %v258
    %799 = vmatprep.subr.mxu0 0.0
    %800 = vmatpush1.msra.mxu0 %v259
    %801 = vmatprep.subr.mxu0 0.0
    %802 = vmatpush1.msra.mxu0 %v260
    %803 = vmatprep.subr.mxu0 0.0
    %804 = vmatpush1.msra.mxu0 %v261
    %805 = vmatprep.subr.mxu0 0.0
    %806 = vmatpush1.msra.mxu0 0.0
    %807 = vmatprep.subr.mxu0 0.0
    %808 = vmatpush1.msra.mxu0 0.0
    %809 = vmatprep.subr.mxu0 0.0
    %810 = vmatpush1.msra.mxu0 0.0
    %811 = vmatprep.subr.mxu0 0.0
    %812 = vmatpush1.msra.mxu0 0.0
    %813 = vmatprep.subr.mxu0 0.0
    %814 = vmatpush1.msra.mxu0 0.0
    %815 = vmatprep.subr.mxu0 0.0
    %816 = vmatpush1.msra.mxu0 0.0
    %817 = vmatprep.subr.mxu0 0.0
    %818 = vmatpush1.msra.mxu0 0.0
    %819 = vmatprep.subr.mxu0 0.0
    %820 = vmatpush1.msra.mxu0 0.0
    %821 = vmatprep.subr.mxu0 0.0
    %822 = vmatpush1.msra.mxu0 0.0
    %823 = vmatprep.subr.mxu0 0.0
    %824 = vmatpush1.msra.mxu0 0.0
    %825 = vmatprep.subr.mxu0 0.0
    %826 = vmatpush1.msra.mxu0 0.0
    %827 = vmatprep.subr.mxu0 0.0
    %828 = vmatpush1.msra.mxu0 0.0
    %829 = vmatprep.subr.mxu0 0.0
    %830 = vmatpush1.msra.mxu0 0.0
    %831 = vmatprep.subr.mxu0 0.0
    %832 = vmatpush1.msra.mxu0 0.0
    %833 = vmatprep.subr.mxu0 0.0
    %834 = vmatpush1.msra.mxu0 0.0
    %835 = vmatprep.subr.mxu0 0.0
    %836 = vmatpush1.msra.mxu0 0.0
    %837 = vmatprep.mubr.f32.mxu0 0.0
    %838 = vmatmul.mubr.f32.gmra.mrb[0].mxu0 %v771
    %v839 = vpop.f32.mrb[0].mxu0
    %v840 = vadd.f32 0.0, %v839
    %v841 = vpop.f32.mrb[0].mxu0
    %842 = vdwg.mxu0
    %v843 = vadd.f32 %v772, %v840
    %v844 = vtanh.pop %v843
    %v845 = vld [vmem:[#allocation11] sm:$0xff]
    %v846 = vld [vmem:[#allocation11 + $0x8] sm:$0xff]
    %v847 = vld [vmem:[#allocation11 + $0x10] sm:$0xff]
    %v848 = vld [vmem:[#allocation11 + $0x18] sm:$0xff]
    %v849 = vld [vmem:[#allocation11 + $0x20] sm:$0xff]
    %v850 = vld [vmem:[#allocation11 + $0x28] sm:$0xff]
    %v851 = vld [vmem:[#allocation11 + $0x30] sm:$0xff]
    %v852 = vld [vmem:[#allocation11 + $0x38] sm:$0xff]
    %v853 = vld [vmem:[#allocation11 + $0x40] sm:$0xff]
    %v854 = vld [vmem:[#allocation11 + $0x48] sm:$0xff]
    %v855 = vld [vmem:[#allocation11 + $0x50] sm:$0xff]
    %v856 = vld [vmem:[#allocation11 + $0x58] sm:$0xff]
    %v857 = vld [vmem:[#allocation11 + $0x60] sm:$0xff]
    %v858 = vld [vmem:[#allocation11 + $0x68] sm:$0xff]
    %v859 = vld [vmem:[#allocation11 + $0x70] sm:$0xff]
    %v860 = vld [vmem:[#allocation11 + $0x78] sm:$0xff]
    %v861 = vld [vmem:[%s6] sm:$0x1]
    %v863 = vlaneseq
    %v864 = vshrl.u32 %v863, 7
    %v865 = vsub.s32 0, %v864
    %v866 = vrot.slane %v861, %v865
    %868 = vmatprep.subr.mxu0 0.0
    %869 = vmatpush1.msra.mxu0 %v845
    %870 = vmatprep.subr.mxu0 0.0
    %871 = vmatpush1.msra.mxu0 %v846
    %872 = vmatprep.subr.mxu0 0.0
    %873 = vmatpush1.msra.mxu0 %v847
    %874 = vmatprep.subr.mxu0 0.0
    %875 = vmatpush1.msra.mxu0 %v848
    %876 = vmatprep.subr.mxu0 0.0
    %877 = vmatpush1.msra.mxu0 %v849
    %878 = vmatprep.subr.mxu0 0.0
    %879 = vmatpush1.msra.mxu0 %v850
    %880 = vmatprep.subr.mxu0 0.0
    %881 = vmatpush1.msra.mxu0 %v851
    %882 = vmatprep.subr.mxu0 0.0
    %883 = vmatpush1.msra.mxu0 %v852
    %884 = vmatprep.subr.mxu0 0.0
    %885 = vmatpush1.msra.mxu0 %v853
    %886 = vmatprep.subr.mxu0 0.0
    %887 = vmatpush1.msra.mxu0 %v854
    %888 = vmatprep.subr.mxu0 0.0
    %889 = vmatpush1.msra.mxu0 %v855
    %890 = vmatprep.subr.mxu0 0.0
    %891 = vmatpush1.msra.mxu0 %v856
    %892 = vmatprep.subr.mxu0 0.0
    %893 = vmatpush1.msra.mxu0 %v857
    %894 = vmatprep.subr.mxu0 0.0
    %895 = vmatpush1.msra.mxu0 %v858
    %896 = vmatprep.subr.mxu0 0.0
    %897 = vmatpush1.msra.mxu0 %v859
    %898 = vmatprep.subr.mxu0 0.0
    %899 = vmatpush1.msra.mxu0 %v860
    %900 = vmatprep.subr.mxu0 0.0
    %901 = vmatpush1.msra.mxu0 0.0
    %902 = vmatprep.subr.mxu0 0.0
    %903 = vmatpush1.msra.mxu0 0.0
    %904 = vmatprep.subr.mxu0 0.0
    %905 = vmatpush1.msra.mxu0 0.0
    %906 = vmatprep.subr.mxu0 0.0
    %907 = vmatpush1.msra.mxu0 0.0
    %908 = vmatprep.subr.mxu0 0.0
    %909 = vmatpush1.msra.mxu0 0.0
    %910 = vmatprep.subr.mxu0 0.0
    %911 = vmatpush1.msra.mxu0 0.0
    %912 = vmatprep.subr.mxu0 0.0
    %913 = vmatpush1.msra.mxu0 0.0
    %914 = vmatprep.subr.mxu0 0.0
    %915 = vmatpush1.msra.mxu0 0.0
    %916 = vmatprep.subr.mxu0 0.0
    %917 = vmatpush1.msra.mxu0 0.0
    %918 = vmatprep.subr.mxu0 0.0
    %919 = vmatpush1.msra.mxu0 0.0
    %920 = vmatprep.subr.mxu0 0.0
    %921 = vmatpush1.msra.mxu0 0.0
    %922 = vmatprep.subr.mxu0 0.0
    %923 = vmatpush1.msra.mxu0 0.0
    %924 = vmatprep.subr.mxu0 0.0
    %925 = vmatpush1.msra.mxu0 0.0
    %926 = vmatprep.subr.mxu0 0.0
    %927 = vmatpush1.msra.mxu0 0.0
    %928 = vmatprep.subr.mxu0 0.0
    %929 = vmatpush1.msra.mxu0 0.0
    %930 = vmatprep.subr.mxu0 0.0
    %931 = vmatpush1.msra.mxu0 0.0
    %932 = vmatprep.mubr.f32.mxu0 0.0
    %933 = vmatmul.mubr.f32.gmra.mrb[0].mxu0 %v844
    %v934 = vpop.f32.mrb[0].mxu0
    %v935 = vadd.f32 %v866, %v934
    %v936 = vpop.f32.mrb[0].mxu0
    %937 = vdwg.mxu0
    %938 = vst [vmem:[#allocation12] sm:$0xff] %v935
    // Predicated region
    $region50: #{tpu_custom_call.1} parent=1 // pred_check
      _
    $region51: #{tpu_custom_call.1} parent=1 // pred_check_branch
      %940 = sbr.rel (0) target = $region53
    $region52: #{tpu_custom_call.1} parent=1 // pred_region
      %s942 = ssub.s32 128, 128
      %943 = vsyncadd [#allocation5], %s942
      %s945 = sshll.u32 [#allocation12], 4
      %s946 = int_to_ptr.vmem [resolvable:$true] %s945
      %948 = dma.vmem_to_hbm [thread:$0]  %s946, 128, %s7, [#allocation5]
    $region53: #{tpu_custom_call.1} parent=1 // pred_fallthru
      _
    // Predicated region
    $region54: #{tpu_custom_call.1} parent=1 // pred_check
      _
    $region55: #{tpu_custom_call.1} parent=1 // pred_check_branch
      %950 = sbr.rel (0) target = $region57
    $region56: #{tpu_custom_call.1} parent=1 // pred_region
      %951 = dma.done [#allocation5], 128
    $region57: #{tpu_custom_call.1} parent=1 // pred_fallthru
      _
    %952 = vsyncpa [#allocation4], 1
    %953 = vsyncpa [#allocation7], 1
    %954 = vsyncpa [#allocation10], 1
    %955 = vsyncpa [#allocation5], 1

</llo_original>
